<compile_context>
chip_gen: v5e
topology: v5e:2x2
jax: 0.10.0
libtpu: 0.0.40
codegen_flags: <defaults>
</compile_context>

<pallas_src>
import functools

import jax
import jax.numpy as jnp
from jax.experimental import pallas as pl
from jax.experimental.pallas import tpu as pltpu


def _projection_kernel(x_ref, out_ref, *, axis):
    # Pure data movement: one full-tile load, then K static lane-slice copies.
    x = x_ref[...]
    for j, a in enumerate(axis):
        out_ref[:, j:j + 1] = x[:, a:a + 1].astype(out_ref.dtype)


def projection_forward(x, axis, *, tile_n=2048):
    """Pallas implementation of Projection.forward: x[:, axis].

    x:    (N, D) array (any float/int dtype)
    axis: static int or tuple/list of ints (negative indices allowed)
    returns (N,) if axis is an int, else (N, len(axis)), same dtype as x.
    """
    squeeze = isinstance(axis, int)
    axis_t = (axis,) if squeeze else tuple(int(a) for a in axis)

    N, D = x.shape
    axis_t = tuple(a + D if a < 0 else a for a in axis_t)
    K = len(axis_t)
    for a in axis_t:
        assert 0 <= a < D, f"axis {a} out of range for D={D}"

    # Tile selection: multiple of 8 sublanes, no larger than the padded N.
    n_round8 = pl.cdiv(N, 8) * 8
    tile_n = max(8, (int(tile_n) // 8) * 8)
    tile_n = min(tile_n, n_round8)

    n_pad = pl.cdiv(N, tile_n) * tile_n
    x_p = x if n_pad == N else jnp.pad(x, ((0, n_pad - N), (0, 0)))

    kernel = functools.partial(_projection_kernel, axis=axis_t)

    out = pl.pallas_call(
        kernel,
        out_shape=jax.ShapeDtypeStruct((n_pad, K), x.dtype),
        grid_spec=pltpu.PrefetchScalarGridSpec(
            num_scalar_prefetch=0,
            grid=(n_pad // tile_n,),
            in_specs=[pl.BlockSpec((tile_n, D), lambda i: (i, 0))],
            out_specs=pl.BlockSpec((tile_n, K), lambda i: (i, 0)),
        ),
        compiler_params=pltpu.CompilerParams(
            dimension_semantics=("parallel",),  # independent tiles -> megacore friendly
        ),
    )(x_p)

    out = out[:N]
    return out.reshape(N) if squeeze else out


if __name__ == "__main__":
    key = jax.random.PRNGKey(0)
    # Small phase-space-like shape; N deliberately NOT a multiple of the tile
    # to exercise the remainder handling.
    N, D = 500, 6
    x = jax.random.normal(key, (N, D), dtype=jnp.float32)

    # Tuple axis -> (N, 2); small tile to exercise a multi-step grid.
    axis = (0, 2)
    out = projection_forward(x, axis, tile_n=128)
    out = jax.block_until_ready(out)
    ref = x[:, jnp.array(axis)]
    assert out.shape == (N, len(axis)), out.shape
    assert out.dtype == x.dtype
    assert jnp.array_equal(out, ref), "tuple-axis projection mismatch"

    # Int axis -> (N,); default (large) tile, single grid step.
    out1 = projection_forward(x, 3)
    out1 = jax.block_until_ready(out1)
    assert out1.shape == (N,), out1.shape
    assert jnp.array_equal(out1, x[:, 3]), "int-axis projection mismatch"

    # Negative axis, like PyTorch indexing.
    out2 = jax.block_until_ready(projection_forward(x, -1, tile_n=128))
    assert jnp.array_equal(out2, x[:, D - 1]), "negative-axis projection mismatch"

    print("KERNEL_OK")
</pallas_src>

<mosaic_0001>
module attributes {stable_mosaic.version = 11 : i64} {
  func.func @_projection_kernel(%arg0: i32, %arg1: memref<128x6xf32, #tpu.memory_space<vmem>>, %arg2: memref<128x2xf32, #tpu.memory_space<vmem>>) attributes {dimension_semantics = [#tpu.dimension_semantics<parallel>], iteration_bounds = array<i64: 4>, scalar_prefetch = 0 : i64, scratch_operands = 0 : i64, tpu.core_type = #tpu.core_type<tc>, window_params = [{transform_indices = @transform_0, window_bounds = array<i64: 128, 6>}, {transform_indices = @transform_1, window_bounds = array<i64: 128, 2>}]} {
    %c0 = arith.constant 0 : index
    %c0_0 = arith.constant 0 : index
    %0 = vector.load %arg1[%c0, %c0_0] : memref<128x6xf32, #tpu.memory_space<vmem>>, vector<128x6xf32>
    %1 = vector.extract_strided_slice %0 {offsets = [0, 0], sizes = [128, 1], strides = [1, 1]} : vector<128x6xf32> to vector<128x1xf32>
    %c0_1 = arith.constant 0 : index
    %c0_2 = arith.constant 0 : index
    %2 = vector.load %arg2[%c0_1, %c0_2] : memref<128x2xf32, #tpu.memory_space<vmem>>, vector<128x1xf32>
    tpu.vector_store %arg2[%c0_1, %c0_2], %1 {strides = array<i32>} : memref<128x2xf32, #tpu.memory_space<vmem>>, vector<128x1xf32>,
    %3 = vector.extract_strided_slice %0 {offsets = [0, 2], sizes = [128, 1], strides = [1, 1]} : vector<128x6xf32> to vector<128x1xf32>
    %c0_3 = arith.constant 0 : index
    %c1 = arith.constant 1 : index
    %4 = vector.load %arg2[%c0_3, %c1] : memref<128x2xf32, #tpu.memory_space<vmem>>, vector<128x1xf32>
    tpu.vector_store %arg2[%c0_3, %c1], %3 {strides = array<i32>} : memref<128x2xf32, #tpu.memory_space<vmem>>, vector<128x1xf32>,
    return
  }
  func.func @transform_0(%arg0: i32) -> (i32, i32) {
    %c0_i32 = arith.constant 0 : i32
    %c0_i32_0 = arith.constant 0 : i32
    return %arg0, %c0_i32 : i32, i32
  }
  func.func @transform_1(%arg0: i32) -> (i32, i32) {
    %c0_i32 = arith.constant 0 : i32
    %c0_i32_0 = arith.constant 0 : i32
    return %arg0, %c0_i32 : i32, i32
  }
}

</mosaic_0001>

<llo_original>
// kernel: tpu_custom_call.1
$region0: #{tpu_custom_call.1}
  #allocation0 [shape = 'u32[]', space=smem, size = 0x4, offset = 0x4, fixed_abs, tag = 'smem constant byte address 0x4 - core index']
  #allocation1 [shape = 'u32[72,128]{1,0:T(1,128)}', space=vmem, size = 0x9000, scoped, tag = 'internal scratch']
  %s0 = inlined_call_operand.vmem [shape: f32[512,6], index: 0, kind: input, shape index: {}]
  %s1 = inlined_call_operand.vmem [shape: f32[512,2], index: 1, kind: output, shape index: {}]
  %s2 = sld [smem:[#allocation0]]
  $region37: #{tpu_custom_call.1} parent=0
    _
  %s4 = ssub.s32 1, %s2
  %s5 = scalar_select 0, %s4, %s2
  loop: start=0, step=1, limit=6
  $region2: #{tpu_custom_call.1} parent=0 // loop_pre_header
    _
  $region3: #{tpu_custom_call.1} parent=0 // loop_header
    %s7 = sphi 0, %s11
    %p8 = scmp.ge.s32.totalorder %s7, 6
    %s17 = sphi 0, %s19
    %s20 = sphi 0, %s17
    %s21 = sphi 0, %s20
    %s37 = sphi 0, %s21
    %s43 = sphi 0, %s45
    %s46 = sphi 0, %s43
    %s47 = sphi 0, %s46
    %s63 = sphi 0, %s47
  $region4: #{tpu_custom_call.1} parent=0 // loop_header_branch
    %10 = sbr.rel (%p8) target = $region8
  $region5: #{tpu_custom_call.1} parent=0 // loop_body
    %s12 = ssub.s32 %s7, 1
    %s13 = ssub.s32 %s7, 2
    %s14 = sadd.s32 %s7, 1
    %s15 = ssub.s32 %s7, %s14
    %p16 = scmp.eq.s32.totalorder %s15, 0
    %s18 = sadd.s32 %s17, 1
    %s19 = scalar_select %p16, %s17, %s18
    %p22 = pneg %p16
    %p23 = scmp.eq.s32.totalorder %s7, 3
    %p24 = por %p22, %p23
    %p25 = scmp.ne.s32.totalorder %s17, %s20
    %p26 = scmp.eq.s32.totalorder %s7, 0
    %p27 = por %p25, %p26
    %p28 = scmp.ne.s32.totalorder %s17, %s20
    %p29 = scmp.eq.s32.totalorder %s12, 3
    %p30 = por %p28, %p29
    %p31 = scmp.ne.s32.totalorder %s20, %s21
    %p32 = scmp.eq.s32.totalorder %s12, 0
    %p33 = por %p31, %p32
    %p34 = scmp.ne.s32.totalorder %s20, %s21
    %p35 = scmp.eq.s32.totalorder %s13, 3
    %p36 = por %p34, %p35
    %p38 = scmp.ne.s32.totalorder %s21, %s37
    %p39 = scmp.eq.s32.totalorder %s13, 0
    %p40 = por %p38, %p39
    %s41 = ssub.s32 %s7, %s14
    %p42 = scmp.eq.s32.totalorder %s41, 0
    %s44 = sadd.s32 %s43, 1
    %s45 = scalar_select %p42, %s43, %s44
    %p48 = pneg %p42
    %p49 = scmp.eq.s32.totalorder %s7, 3
    %p50 = por %p48, %p49
    %p51 = scmp.ne.s32.totalorder %s43, %s46
    %p52 = scmp.eq.s32.totalorder %s7, 0
    %p53 = por %p51, %p52
    %p54 = scmp.ne.s32.totalorder %s43, %s46
    %p55 = scmp.eq.s32.totalorder %s12, 3
    %p56 = por %p54, %p55
    %p57 = scmp.ne.s32.totalorder %s46, %s47
    %p58 = scmp.eq.s32.totalorder %s12, 0
    %p59 = por %p57, %p58
    %p60 = scmp.ne.s32.totalorder %s46, %s47
    %p61 = scmp.eq.s32.totalorder %s13, 3
    %p62 = por %p60, %p61
    %p64 = scmp.ne.s32.totalorder %s47, %s63
    %p65 = scmp.eq.s32.totalorder %s13, 0
    %p66 = por %p64, %p65
    %p67 = scmp.le.s32.totalorder 1, %s7
    %p68 = scmp.lt.s32.totalorder %s7, 5
    %p69 = pnand %p67, %p68
    %p70 = pneg %p69
    // Predicated region
    $region9: #{tpu_custom_call.1} parent=5 // pred_check
      _
    $region10: #{tpu_custom_call.1} parent=5 // pred_check_branch
      %72 = sbr.rel (%p69) target = $region12
    $region11: #{tpu_custom_call.1} parent=5 // pred_region
      %s73 = ssub.s32 %s7, 1
    $region12: #{tpu_custom_call.1} parent=5 // pred_fallthru
      _
    %p74 = scmp.lt.s32.totalorder %s7, 4
    // Predicated region
    $region13: #{tpu_custom_call.1} parent=5 // pred_check
      %p75 = pneg %p74
    $region14: #{tpu_custom_call.1} parent=5 // pred_check_branch
      %77 = sbr.rel (%p75) target = $region16
    $region15: #{tpu_custom_call.1} parent=5 // pred_region
      // Predicated region
      $region17: #{tpu_custom_call.1} parent=15 // pred_check
        %p78 = pneg %p27
      $region18: #{tpu_custom_call.1} parent=15 // pred_check_branch
        %80 = sbr.rel (%p78) target = $region20
      $region19: #{tpu_custom_call.1} parent=15 // pred_region
        %s81 = smul.u32 16, %s7
        %p82 = scmp.lt.s32.totalorder %s81, 63
        %s83 = scalar_select %p82, %s81, 63
        %s84 = smul.addr %s83, 8
        %s85 = scalar_lea.vmem %s0, %s84
        %s86 = smul.u32 16, %s7
      $region20: #{tpu_custom_call.1} parent=15 // pred_fallthru
        _
    $region16: #{tpu_custom_call.1} parent=5 // pred_fallthru
      _
    %p87 = scmp.le.s32.totalorder 1, %s7
    %p88 = scmp.lt.s32.totalorder %s7, 5
    %p89 = pnand %p87, %p88
    %p90 = pneg %p89
    // Predicated region
    $region21: #{tpu_custom_call.1} parent=5 // pred_check
      _
    $region22: #{tpu_custom_call.1} parent=5 // pred_check_branch
      %92 = sbr.rel (%p89) target = $region24
    $region23: #{tpu_custom_call.1} parent=5 // pred_region
      %s93 = ssub.s32 %s7, 1
      %s94 = smul.u32 16, %s12
      %p95 = scmp.lt.s32.totalorder %s94, 63
      %s96 = scalar_select %p95, %s94, 63
      %s97 = smul.addr %s96, 8
      %s98 = scalar_lea.vmem %s0, %s97
      %p99 = pneg %p33
      %p100 = pneg %p30
      %p101 = pneg %p59
      %p102 = pneg %p56
      %s103 = smul.u32 16, %s12
      %p104 = scmp.lt.s32.totalorder %s103, 63
      %s105 = scalar_select %p104, %s103, 63
      %s106 = smul.addr %s105, 8
      %s107 = scalar_lea.vmem %s1, %s106
      %s108 = smul.u32 16, %s12
      %p109 = scmp.lt.s32.totalorder %s108, 63
      %s110 = scalar_select %p109, %s108, 63
      %s111 = smul.addr %s110, 8
      %s112 = scalar_lea.vmem %s0, %s111
      %s113 = smul.u32 16, %s12
      %s114 = smul.u32 16, %s12
      %p115 = scmp.lt.s32.totalorder %s114, 63
      %s116 = scalar_select %p115, %s114, 63
      %s117 = smul.addr %s116, 8
      %s118 = scalar_lea.vmem %s1, %s117
      %s119 = smul.u32 16, %s12
      %v120 = vld [vmem:[%s112] sm:$0xff]
      %v121 = vld [vmem:[%s112 + $0x8] sm:$0xff]
      %v122 = vld [vmem:[%s112 + $0x10] sm:$0xff]
      %v123 = vld [vmem:[%s112 + $0x18] sm:$0xff]
      %v124 = vld [vmem:[%s112 + $0x20] sm:$0xff]
      %v125 = vld [vmem:[%s112 + $0x28] sm:$0xff]
      %v126 = vld [vmem:[%s112 + $0x30] sm:$0xff]
      %v127 = vld [vmem:[%s112 + $0x38] sm:$0xff]
      %v128 = vld [vmem:[%s112 + $0x40] sm:$0xff]
      %v129 = vld [vmem:[%s112 + $0x48] sm:$0xff]
      %v130 = vld [vmem:[%s112 + $0x50] sm:$0xff]
      %v131 = vld [vmem:[%s112 + $0x58] sm:$0xff]
      %v132 = vld [vmem:[%s112 + $0x60] sm:$0xff]
      %v133 = vld [vmem:[%s112 + $0x68] sm:$0xff]
      %v134 = vld [vmem:[%s112 + $0x70] sm:$0xff]
      %v135 = vld [vmem:[%s112 + $0x78] sm:$0xff]
      %vm136 = vcmask 7168
      %137 = vst.msk [vmem:[%s118] sm:$0xff] %vm136, %v120
      %138 = vst.msk [vmem:[%s118 + $0x8] sm:$0xff] %vm136, %v121
      %139 = vst.msk [vmem:[%s118 + $0x10] sm:$0xff] %vm136, %v122
      %140 = vst.msk [vmem:[%s118 + $0x18] sm:$0xff] %vm136, %v123
      %141 = vst.msk [vmem:[%s118 + $0x20] sm:$0xff] %vm136, %v124
      %142 = vst.msk [vmem:[%s118 + $0x28] sm:$0xff] %vm136, %v125
      %143 = vst.msk [vmem:[%s118 + $0x30] sm:$0xff] %vm136, %v126
      %144 = vst.msk [vmem:[%s118 + $0x38] sm:$0xff] %vm136, %v127
      %145 = vst.msk [vmem:[%s118 + $0x40] sm:$0xff] %vm136, %v128
      %146 = vst.msk [vmem:[%s118 + $0x48] sm:$0xff] %vm136, %v129
      %147 = vst.msk [vmem:[%s118 + $0x50] sm:$0xff] %vm136, %v130
      %148 = vst.msk [vmem:[%s118 + $0x58] sm:$0xff] %vm136, %v131
      %149 = vst.msk [vmem:[%s118 + $0x60] sm:$0xff] %vm136, %v132
      %150 = vst.msk [vmem:[%s118 + $0x68] sm:$0xff] %vm136, %v133
      %151 = vst.msk [vmem:[%s118 + $0x70] sm:$0xff] %vm136, %v134
      %152 = vst.msk [vmem:[%s118 + $0x78] sm:$0xff] %vm136, %v135
      %169 = vrot.lane.b32.xlu0 %v120, 127
      %v170 = vpop.permute.xlu0 %169
      %171 = vrot.lane.b32.xlu0 %v121, 127
      %v172 = vpop.permute.xlu0 %171
      %173 = vrot.lane.b32.xlu0 %v122, 127
      %v174 = vpop.permute.xlu0 %173
      %175 = vrot.lane.b32.xlu0 %v123, 127
      %v176 = vpop.permute.xlu0 %175
      %177 = vrot.lane.b32.xlu0 %v124, 127
      %v178 = vpop.permute.xlu0 %177
      %179 = vrot.lane.b32.xlu0 %v125, 127
      %v180 = vpop.permute.xlu0 %179
      %181 = vrot.lane.b32.xlu0 %v126, 127
      %v182 = vpop.permute.xlu0 %181
      %183 = vrot.lane.b32.xlu0 %v127, 127
      %v184 = vpop.permute.xlu0 %183
      %185 = vrot.lane.b32.xlu0 %v128, 127
      %v186 = vpop.permute.xlu0 %185
      %187 = vrot.lane.b32.xlu0 %v129, 127
      %v188 = vpop.permute.xlu0 %187
      %189 = vrot.lane.b32.xlu0 %v130, 127
      %v190 = vpop.permute.xlu0 %189
      %191 = vrot.lane.b32.xlu0 %v131, 127
      %v192 = vpop.permute.xlu0 %191
      %193 = vrot.lane.b32.xlu0 %v132, 127
      %v194 = vpop.permute.xlu0 %193
      %195 = vrot.lane.b32.xlu0 %v133, 127
      %v196 = vpop.permute.xlu0 %195
      %197 = vrot.lane.b32.xlu0 %v134, 127
      %v198 = vpop.permute.xlu0 %197
      %199 = vrot.lane.b32.xlu0 %v135, 127
      %v200 = vpop.permute.xlu0 %199
      %vm217 = vcmask 15368
      %218 = vst.msk [vmem:[%s118] sm:$0xff] %vm217, %v170
      %219 = vst.msk [vmem:[%s118 + $0x8] sm:$0xff] %vm217, %v172
      %220 = vst.msk [vmem:[%s118 + $0x10] sm:$0xff] %vm217, %v174
      %221 = vst.msk [vmem:[%s118 + $0x18] sm:$0xff] %vm217, %v176
      %222 = vst.msk [vmem:[%s118 + $0x20] sm:$0xff] %vm217, %v178
      %223 = vst.msk [vmem:[%s118 + $0x28] sm:$0xff] %vm217, %v180
      %224 = vst.msk [vmem:[%s118 + $0x30] sm:$0xff] %vm217, %v182
      %225 = vst.msk [vmem:[%s118 + $0x38] sm:$0xff] %vm217, %v184
      %226 = vst.msk [vmem:[%s118 + $0x40] sm:$0xff] %vm217, %v186
      %227 = vst.msk [vmem:[%s118 + $0x48] sm:$0xff] %vm217, %v188
      %228 = vst.msk [vmem:[%s118 + $0x50] sm:$0xff] %vm217, %v190
      %229 = vst.msk [vmem:[%s118 + $0x58] sm:$0xff] %vm217, %v192
      %230 = vst.msk [vmem:[%s118 + $0x60] sm:$0xff] %vm217, %v194
      %231 = vst.msk [vmem:[%s118 + $0x68] sm:$0xff] %vm217, %v196
      %232 = vst.msk [vmem:[%s118 + $0x70] sm:$0xff] %vm217, %v198
      %233 = vst.msk [vmem:[%s118 + $0x78] sm:$0xff] %vm217, %v200
      %s234 = smul.u32 16, %s12
      %p235 = scmp.lt.s32.totalorder %s234, 63
      %s236 = scalar_select %p235, %s234, 63
      %s237 = smul.addr %s236, 8
      %s238 = scalar_lea.vmem %s1, %s237
      // Predicated region
      $region25: #{tpu_custom_call.1} parent=23 // pred_check
        %p239 = pneg %p56
      $region26: #{tpu_custom_call.1} parent=23 // pred_check_branch
        %241 = sbr.rel (%p239) target = $region28
      $region27: #{tpu_custom_call.1} parent=23 // pred_region
        %s242 = smul.u32 16, %s12
      $region28: #{tpu_custom_call.1} parent=23 // pred_fallthru
        _
    $region24: #{tpu_custom_call.1} parent=5 // pred_fallthru
      _
    %p243 = scmp.le.s32.totalorder 2, %s7
    // Predicated region
    $region29: #{tpu_custom_call.1} parent=5 // pred_check
      %p244 = pneg %p243
    $region30: #{tpu_custom_call.1} parent=5 // pred_check_branch
      %246 = sbr.rel (%p244) target = $region32
    $region31: #{tpu_custom_call.1} parent=5 // pred_region
      %s247 = ssub.s32 %s7, 2
      // Predicated region
      $region33: #{tpu_custom_call.1} parent=31 // pred_check
        %p248 = pneg %p62
      $region34: #{tpu_custom_call.1} parent=31 // pred_check_branch
        %250 = sbr.rel (%p248) target = $region36
      $region35: #{tpu_custom_call.1} parent=31 // pred_region
        %s251 = smul.u32 16, %s13
        %p252 = scmp.lt.s32.totalorder %s251, 63
        %s253 = scalar_select %p252, %s251, 63
        %s254 = smul.addr %s253, 8
        %s255 = scalar_lea.vmem %s1, %s254
      $region36: #{tpu_custom_call.1} parent=31 // pred_fallthru
        _
    $region32: #{tpu_custom_call.1} parent=5 // pred_fallthru
      _
  $region6: #{tpu_custom_call.1} parent=0 // loop_footer
    %s11 = sadd.s32 1, %s7
  $region7: #{tpu_custom_call.1} parent=0 // loop_footer_branch
    %6 = sbr.rel target = $region3
  $region8: #{tpu_custom_call.1} parent=0 // loop_exit
    _

</llo_original>
